<compile_context>
chip_gen: v5e
topology: v5e:2x2
jax: 0.10.0
libtpu: 0.0.40
codegen_flags: <defaults>
</compile_context>

<pallas_src>
import jax
import jax.numpy as jnp
from jax.experimental import pallas as pl
from jax.experimental.pallas import tpu as pltpu


def _resize_boxes_kernel(ratios_ref, boxes_ref, out_ref):
    """Single-step kernel over the whole batch.

    ratios_ref : VMEM f32[B, 2]   -- (ratio_h, ratio_w) per image
    boxes_ref  : VMEM f32[B, 4N]  -- flattened (x1, y1, x2, y2) repeating
    out_ref    : VMEM f32[B, 4N]
    """
    bx = boxes_ref[...]                                    # (B, 4N)
    r = ratios_ref[...]                                    # (B, 2)
    ratio_h = r[:, 0:1]                                    # (B, 1)
    ratio_w = r[:, 1:2]                                    # (B, 1)

    # Even lanes (0, 2 mod 4 -> x1, x2) scale by ratio_w; odd lanes (y1, y2)
    # scale by ratio_h.
    lane = jax.lax.broadcasted_iota(jnp.int32, bx.shape, 1)
    scale = jnp.where((lane % 2) == 0, ratio_w, ratio_h)   # (B, 4N)
    out_ref[...] = bx * scale


def resize_boxes_pallas(boxes, orig_sizes, new_sizes):
    """boxes: f32[B, N, 4]; orig_sizes/new_sizes: f32[B, 2] (h, w)."""
    B, N, _ = boxes.shape
    # Free, contiguous reshape (no HBM transpose): [B, N, 4] -> [B, 4N].
    boxes_flat = boxes.astype(jnp.float32).reshape(B, 4 * N)

    # Precompute per-image ratios once in the wrapper (tiny [B, 2]).
    orig_sizes = orig_sizes.astype(jnp.float32)
    new_sizes = new_sizes.astype(jnp.float32)
    ratios = new_sizes / orig_sizes                         # (ratio_h, ratio_w)

    out_flat = pl.pallas_call(
        _resize_boxes_kernel,
        out_shape=jax.ShapeDtypeStruct((B, 4 * N), jnp.float32),
        # Single invocation (no grid): whole arrays live in VMEM for one step.
        in_specs=[
            pl.BlockSpec(memory_space=pltpu.MemorySpace.VMEM),  # ratios [B, 2]
            pl.BlockSpec(memory_space=pltpu.MemorySpace.VMEM),  # boxes  [B, 4N]
        ],
        out_specs=pl.BlockSpec(memory_space=pltpu.MemorySpace.VMEM),
    )(ratios, boxes_flat)

    return out_flat.reshape(B, N, 4)                        # free reshape back


def fake_rpn_forward(edgeboxes_table, image_ids, orig_sizes, new_sizes):
    """Mirrors FakeRegionProposalNetwork.forward.

    edgeboxes_table : f32[num_dataset_images, N, 4]  (synthetic "pickle")
    image_ids       : i32[B]      -- targets[idx]['image_id']
    orig_sizes      : f32[B, 2]   -- targets[idx]['size']      (h, w)
    new_sizes       : f32[B, 2]   -- images.image_sizes[idx]   (h, w)
    Returns (proposals: list of f32[N, 4], losses: {}).
    """
    # Glue: per-image edgebox lookup (replaces the pickle dict lookup).
    boxes = edgeboxes_table[image_ids]                      # [B, N, 4]
    resized = resize_boxes_pallas(boxes, orig_sizes, new_sizes)
    proposals = [resized[i] for i in range(resized.shape[0])]
    losses = {}
    return proposals, losses


def _resize_boxes_ref(boxes, orig_sizes, new_sizes):
    """Pure-JAX reference of torchvision resize_boxes, vectorized over batch."""
    ratio_h = new_sizes[:, 0] / orig_sizes[:, 0]
    ratio_w = new_sizes[:, 1] / orig_sizes[:, 1]
    scale = jnp.stack([ratio_w, ratio_h, ratio_w, ratio_h], axis=1)  # [B, 4]
    return boxes * scale[:, None, :]


if __name__ == "__main__":
    key = jax.random.PRNGKey(0)
    k_xy, k_wh = jax.random.split(key, 2)

    num_dataset_images = 8   # size of the synthetic "edgeboxes" table
    B = 2                    # batch of images
    N = 128                  # proposals per image

    # Deterministic synthetic edgeboxes: valid boxes with x1<x2, y1<y2.
    xy1 = jax.random.uniform(k_xy, (num_dataset_images, N, 2),
                             minval=0.0, maxval=300.0)
    wh = jax.random.uniform(k_wh, (num_dataset_images, N, 2),
                            minval=1.0, maxval=200.0)
    edgeboxes_table = jnp.concatenate([xy1, xy1 + wh], axis=-1)  # [D, N, 4]
    edgeboxes_table = edgeboxes_table.astype(jnp.float32)

    # Per-image metadata (what `targets` / `images.image_sizes` would carry).
    image_ids = jnp.array([3, 5], dtype=jnp.int32)
    orig_sizes = jnp.array([[480.0, 640.0],
                            [426.0, 640.0]], dtype=jnp.float32)   # (h, w)
    new_sizes = jnp.array([[800.0, 1066.0],
                           [800.0, 1202.0]], dtype=jnp.float32)   # (h, w)

    proposals, losses = fake_rpn_forward(
        edgeboxes_table, image_ids, orig_sizes, new_sizes)
    stacked = jnp.stack(proposals, axis=0)
    jax.block_until_ready(stacked)

    # Correctness check against pure-JAX reference.
    ref = _resize_boxes_ref(edgeboxes_table[image_ids], orig_sizes, new_sizes)
    assert stacked.shape == (B, N, 4)
    assert isinstance(losses, dict) and len(losses) == 0
    assert bool(jnp.allclose(stacked, ref, rtol=1e-6, atol=1e-5))

    print("KERNEL_OK")
</pallas_src>

<mosaic_0001>
module attributes {stable_mosaic.version = 11 : i64} {
  func.func @_resize_boxes_kernel(%arg0: memref<2x2xf32, #tpu.memory_space<vmem>>, %arg1: memref<2x512xf32, #tpu.memory_space<vmem>>, %arg2: memref<2x512xf32, #tpu.memory_space<vmem>>) attributes {dimension_semantics = [], scalar_prefetch = 0 : i64, scratch_operands = 0 : i64, tpu.core_type = #tpu.core_type<tc>} {
    %c0 = arith.constant 0 : index
    %c0_0 = arith.constant 0 : index
    %0 = vector.load %arg1[%c0, %c0_0] : memref<2x512xf32, #tpu.memory_space<vmem>>, vector<2x512xf32>
    %c0_1 = arith.constant 0 : index
    %c0_2 = arith.constant 0 : index
    %1 = vector.load %arg0[%c0_1, %c0_2] : memref<2x2xf32, #tpu.memory_space<vmem>>, vector<2x2xf32>
    %2 = vector.extract_strided_slice %1 {offsets = [0, 0], sizes = [2, 1], strides = [1, 1]} : vector<2x2xf32> to vector<2x1xf32>
    %3 = vector.extract_strided_slice %1 {offsets = [0, 1], sizes = [2, 1], strides = [1, 1]} : vector<2x2xf32> to vector<2x1xf32>
    %4 = tpu.iota {dimensions = array<i32: 1>} : vector<2x512xi32>
    %c2_i32 = arith.constant 2 : i32
    %c0_i32 = arith.constant 0 : i32
    %5 = arith.cmpi eq, %c2_i32, %c0_i32 : i32
    %c1_i32 = arith.constant 1 : i32
    %6 = arith.select %5, %c1_i32, %c2_i32 : i32
    %7 = vector.broadcast %6 : i32 to vector<2x512xi32>
    %8 = arith.remsi %4, %7 : vector<2x512xi32>
    %c0_i32_3 = arith.constant 0 : i32
    %9 = vector.broadcast %c0_i32_3 : i32 to vector<2x512xi32>
    %10 = arith.cmpi ne, %8, %9 : vector<2x512xi32>
    %c0_i32_4 = arith.constant 0 : i32
    %11 = vector.broadcast %c0_i32_4 : i32 to vector<2x512xi32>
    %12 = arith.cmpi slt, %8, %11 : vector<2x512xi32>
    %c0_i32_5 = arith.constant 0 : i32
    %13 = arith.cmpi slt, %6, %c0_i32_5 : i32
    %14 = vector.broadcast %13 : i1 to vector<2x512xi1>
    %15 = vector.broadcast %14 : vector<2x512xi1> to vector<2x512xi1>
    %16 = arith.xori %12, %15 : vector<2x512xi1>
    %17 = arith.andi %16, %10 : vector<2x512xi1>
    %18 = vector.broadcast %6 : i32 to vector<2x512xi32>
    %19 = arith.addi %8, %18 : vector<2x512xi32>
    %20 = arith.select %17, %19, %8 : vector<2x512xi1>, vector<2x512xi32>
    %c0_i32_6 = arith.constant 0 : i32
    %21 = vector.broadcast %c0_i32_6 : i32 to vector<2x512xi32>
    %22 = arith.cmpi eq, %20, %21 : vector<2x512xi32>
    %23 = vector.shape_cast %3 : vector<2x1xf32> to vector<2x1xf32>
    %24 = vector.broadcast %23 : vector<2x1xf32> to vector<2x512xf32>
    %25 = vector.shape_cast %2 : vector<2x1xf32> to vector<2x1xf32>
    %26 = vector.broadcast %25 : vector<2x1xf32> to vector<2x512xf32>
    %27 = arith.select %22, %24, %26 : vector<2x512xi1>, vector<2x512xf32>
    %28 = arith.mulf %0, %27 : vector<2x512xf32>
    %c0_7 = arith.constant 0 : index
    %c0_8 = arith.constant 0 : index
    %29 = vector.load %arg2[%c0_7, %c0_8] : memref<2x512xf32, #tpu.memory_space<vmem>>, vector<2x512xf32>
    tpu.vector_store %arg2[%c0_7, %c0_8], %28 {strides = array<i32>} : memref<2x512xf32, #tpu.memory_space<vmem>>, vector<2x512xf32>,
    return
  }
}

</mosaic_0001>

<llo_original>
// kernel: tpu_custom_call.1
$region0: #{tpu_custom_call.1}
  #allocation0 [shape = 'u32[]', space=smem, size = 0x4, offset = 0x4, fixed_abs, tag = 'smem constant byte address 0x4 - core index']
  #allocation1 [shape = 'u32[72,128]{1,0:T(1,128)}', space=vmem, size = 0x9000, scoped, tag = 'internal scratch']
  %s0 = inlined_call_operand.hbm [shape: f32[2,2], index: 0, kind: input, shape index: {}]
  %s1 = inlined_call_operand.hbm [shape: f32[2,512], index: 1, kind: input, shape index: {}]
  %s2 = inlined_call_operand.hbm [shape: f32[2,512], index: 2, kind: output, shape index: {}]
  %s3 = sld [smem:[#allocation0]]
  $region26: #{tpu_custom_call.1} parent=0
    _
  %s5 = ssub.s32 1, %s3
  %s6 = scalar_select 0, %s5, %s3
  $region1: #{tpu_custom_call.1} parent=0
    #allocation2 [shape = 'u8[1024]{0}', space=vmem, size = 0x400, scoped, tag = 'input window, operand 0, single buffered']
    #allocation3 [shape = 's32[1]{0}', space=sflag, size = 0x4, scoped, tag = 'scoped memory for tpu_custom_call.1']
    #allocation4 [shape = 's32[1]{0}', space=sflag, size = 0x4, scoped, tag = 'scoped memory for tpu_custom_call.1']
    #allocation5 [shape = 'u8[4096]{0}', space=vmem, size = 0x1000, scoped, tag = 'input window, operand 1, single buffered']
    #allocation6 [shape = 's32[1]{0}', space=sflag, size = 0x4, scoped, tag = 'scoped memory for tpu_custom_call.1']
    #allocation7 [shape = 'u8[4096]{0}', space=vmem, size = 0x1000, scoped, tag = 'output window, operand 0, single buffered']
    %7 = vsyncpa [#allocation3], 0
    %8 = vsyncpa [#allocation6], 0
    %9 = vsyncpa [#allocation4], 0
    // Predicated region
    $region2: #{tpu_custom_call.1} parent=1 // pred_check
      _
    $region3: #{tpu_custom_call.1} parent=1 // pred_check_branch
      %11 = sbr.rel (0) target = $region5
    $region4: #{tpu_custom_call.1} parent=1 // pred_region
      %13 = vsyncadd [#allocation3], 0
      %s15 = sshll.u32 %s0, 4
      %s16 = int_to_ptr.hbm [resolvable:$true] %s15
      %s17 = sshll.u32 [#allocation2], 4
      %s18 = int_to_ptr.vmem [resolvable:$true] %s17
      %20 = dma.hbm_to_vmem [thread:$0]  %s16, 32, %s18, [#allocation3]
    $region5: #{tpu_custom_call.1} parent=1 // pred_fallthru
      _
    // Predicated region
    $region6: #{tpu_custom_call.1} parent=1 // pred_check
      _
    $region7: #{tpu_custom_call.1} parent=1 // pred_check_branch
      %22 = sbr.rel (0) target = $region9
    $region8: #{tpu_custom_call.1} parent=1 // pred_region
      %24 = vsyncadd [#allocation6], 0
      %s26 = sshll.u32 %s1, 4
      %s27 = int_to_ptr.hbm [resolvable:$true] %s26
      %s28 = sshll.u32 [#allocation5], 4
      %s29 = int_to_ptr.vmem [resolvable:$true] %s28
      %31 = dma.hbm_to_vmem [thread:$0]  %s27, 128, %s29, [#allocation6]
    $region9: #{tpu_custom_call.1} parent=1 // pred_fallthru
      _
    // Predicated region
    $region10: #{tpu_custom_call.1} parent=1 // pred_check
      _
    $region11: #{tpu_custom_call.1} parent=1 // pred_check_branch
      %33 = sbr.rel (0) target = $region13
    $region12: #{tpu_custom_call.1} parent=1 // pred_region
      %35 = dma.done [#allocation3], 32
    $region13: #{tpu_custom_call.1} parent=1 // pred_fallthru
      _
    // Predicated region
    $region14: #{tpu_custom_call.1} parent=1 // pred_check
      _
    $region15: #{tpu_custom_call.1} parent=1 // pred_check_branch
      %37 = sbr.rel (0) target = $region17
    $region16: #{tpu_custom_call.1} parent=1 // pred_region
      %39 = dma.done [#allocation6], 128
    $region17: #{tpu_custom_call.1} parent=1 // pred_fallthru
      _
    %v40 = vld [vmem:[#allocation5] sm:$0xff]
    %v41 = vld [vmem:[#allocation2] sm:$0x3]
    %v42 = vlaneseq
    %v43 = vand.u32 %v42, 127
    %v44 = vadd.s32 %v43, 128
    %v45 = vadd.s32 %v43, 256
    %v46 = vadd.s32 %v43, 384
    %vm47 = vcmp.lt.s32.totalorder %v43, 0
    %v48 = vsub.s32 0, %v43
    %v49 = vsel %vm47, %v48, %v43
    %v50 = vshrl.u32 %v49, 1
    %v51 = vand.u32 %v49, 1
    %v52 = vsub.s32 0, %v51
    %v53 = vsel %vm47, %v52, %v51
    %vm54 = vcmp.lt.s32.totalorder %v44, 0
    %v55 = vsub.s32 0, %v44
    %v56 = vsel %vm54, %v55, %v44
    %v57 = vshrl.u32 %v56, 1
    %v58 = vand.u32 %v56, 1
    %v59 = vsub.s32 0, %v58
    %v60 = vsel %vm54, %v59, %v58
    %vm61 = vcmp.lt.s32.totalorder %v45, 0
    %v62 = vsub.s32 0, %v45
    %v63 = vsel %vm61, %v62, %v45
    %v64 = vshrl.u32 %v63, 1
    %v65 = vand.u32 %v63, 1
    %v66 = vsub.s32 0, %v65
    %v67 = vsel %vm61, %v66, %v65
    %vm68 = vcmp.lt.s32.totalorder %v46, 0
    %v69 = vsub.s32 0, %v46
    %v70 = vsel %vm68, %v69, %v46
    %v71 = vshrl.u32 %v70, 1
    %v72 = vand.u32 %v70, 1
    %v73 = vsub.s32 0, %v72
    %v74 = vsel %vm68, %v73, %v72
    %vm75 = vcmp.ne.s32.totalorder %v53, 0
    %vm76 = vcmp.ne.s32.totalorder %v60, 0
    %vm77 = vcmp.ne.s32.totalorder %v67, 0
    %vm78 = vcmp.ne.s32.totalorder %v74, 0
    %vm79 = vcmp.lt.s32.totalorder %v53, 0
    %vm80 = vcmp.lt.s32.totalorder %v60, 0
    %vm81 = vcmp.lt.s32.totalorder %v67, 0
    %vm82 = vcmp.lt.s32.totalorder %v74, 0
    %vm83 = vmand %vm79, %vm75
    %vm84 = vmand %vm80, %vm76
    %vm85 = vmand %vm81, %vm77
    %vm86 = vmand %vm82, %vm78
    %v87 = vadd.s32 %v53, 2
    %v88 = vadd.s32 %v60, 2
    %v89 = vadd.s32 %v67, 2
    %v90 = vadd.s32 %v74, 2
    %v91 = vsel %vm83, %v87, %v53
    %v92 = vsel %vm84, %v88, %v60
    %v93 = vsel %vm85, %v89, %v67
    %v94 = vsel %vm86, %v90, %v74
    %vm95 = vcmp.eq.s32.totalorder %v91, 0
    %vm96 = vcmp.eq.s32.totalorder %v92, 0
    %vm97 = vcmp.eq.s32.totalorder %v93, 0
    %vm98 = vcmp.eq.s32.totalorder %v94, 0
    %100 = vset.pattern.permute.xlu0 1
    %101 = vperm.xlu0 %100, %v41
    %v102 = vpop.permute.xlu0 %101
    %104 = vset.pattern.permute.xlu0 0
    %105 = vperm.xlu0 %104, %v41
    %v106 = vpop.permute.xlu0 %105
    %v108 = vsel %vm95, %v102, %v106
    %v109 = vsel %vm96, %v102, %v106
    %v110 = vsel %vm97, %v102, %v106
    %v111 = vsel %vm98, %v102, %v106
    %v116 = vrot.slane %v109, 6
    %v117 = vrot.slane %v110, 4
    %v118 = vrot.slane %v111, 2
    %vm119 = vcmask 1041408
    %v120 = vsel %vm119, %v108, %v116
    %vm121 = vcmask 1045508
    %v122 = vsel %vm121, %v117, %v118
    %vm123 = vcmask 1043456
    %v124 = vsel %vm123, %v120, %v122
    %v126 = vmul.f32 %v40, %v124
    %127 = vst [vmem:[#allocation7] sm:$0xff] %v126
    // Predicated region
    $region18: #{tpu_custom_call.1} parent=1 // pred_check
      _
    $region19: #{tpu_custom_call.1} parent=1 // pred_check_branch
      %129 = sbr.rel (0) target = $region21
    $region20: #{tpu_custom_call.1} parent=1 // pred_region
      %131 = vsyncadd [#allocation4], 0
      %s133 = sshll.u32 [#allocation7], 4
      %s134 = int_to_ptr.vmem [resolvable:$true] %s133
      %s135 = sshll.u32 %s2, 4
      %s136 = int_to_ptr.hbm [resolvable:$true] %s135
      %138 = dma.vmem_to_hbm [thread:$0]  %s134, 128, %s136, [#allocation4]
    $region21: #{tpu_custom_call.1} parent=1 // pred_fallthru
      _
    // Predicated region
    $region22: #{tpu_custom_call.1} parent=1 // pred_check
      _
    $region23: #{tpu_custom_call.1} parent=1 // pred_check_branch
      %140 = sbr.rel (0) target = $region25
    $region24: #{tpu_custom_call.1} parent=1 // pred_region
      %142 = dma.done [#allocation4], 128
    $region25: #{tpu_custom_call.1} parent=1 // pred_fallthru
      _
    %143 = vsyncpa [#allocation3], 1
    %144 = vsyncpa [#allocation6], 1
    %145 = vsyncpa [#allocation4], 1

</llo_original>
